<compile_context>
chip_gen: v7x
topology: tpu7x:2x2x1
jax: 0.10.0
libtpu: 0.0.40
codegen_flags: <defaults>
</compile_context>

<pallas_src>
import math

import jax
import jax.numpy as jnp
from jax.experimental import pallas as pl
from jax.experimental.pallas import tpu as pltpu

H = 10          # hidden units
LANES = 128     # vreg lane width
SUBLANES = 8    # vreg sublane width
MAX_TILE_ROWS = 2048   # 2048 x 128 x 4B = 1 MiB per buffer -> ~4 MiB pipelined


def mlp_kernel(params_ref, x_ref, o_ref):
    """params_ref: SMEM (3*H + 1,) f32  [w1 | b1 | w2 | b2]
       x_ref/o_ref: VMEM (tile_rows, 128) f32, lane-dense batch slab."""
    x = x_ref[...]                                   # (tile_rows, 128) f32
    acc = jnp.zeros_like(x)
    # Unrolled over the 10 hidden units: scalar * vreg FMAs + relu on the VPU.
    for j in range(H):
        w1j = params_ref[j]
        b1j = params_ref[H + j]
        w2j = params_ref[2 * H + j]
        acc = acc + w2j * jnp.maximum(w1j * x + b1j, 0.0)
    o_ref[...] = acc + params_ref[3 * H]             # + b2


def net_r_forward(x, w1, b1, w2, b2):
    """x: (N, 1) f32; w1: (1, 10); b1: (10,); w2: (10, 1); b2: (1,).
    Returns (N, 1) f32, matching Net_R.forward."""
    N = x.shape[0]

    # Pack all 31 parameters into one SMEM-resident vector.
    params = jnp.concatenate(
        [w1.reshape(-1), b1.reshape(-1), w2.reshape(-1), b2.reshape(-1)]
    ).astype(jnp.float32)                            # (31,)

    # Lane-dense layout: flatten batch, pad to a multiple of (tile_rows * 128),
    # and view as (rows, 128). Padded elements are computed but discarded.
    xf = x.reshape(-1).astype(jnp.float32)
    rows_needed = max(1, pl.cdiv(N, LANES))
    rows_padded = pl.cdiv(rows_needed, SUBLANES) * SUBLANES
    tile_rows = min(MAX_TILE_ROWS, rows_padded)
    rows_total = pl.cdiv(rows_padded, tile_rows) * tile_rows
    padded_n = rows_total * LANES

    xf = jnp.pad(xf, (0, padded_n - N))
    x2d = xf.reshape(rows_total, LANES)

    grid = (rows_total // tile_rows,)
    out2d = pl.pallas_call(
        mlp_kernel,
        out_shape=jax.ShapeDtypeStruct((rows_total, LANES), jnp.float32),
        grid=grid,
        in_specs=[
            # 31 scalars live in SMEM, read as scalar operands (no VMEM tile,
            # no broadcast vregs, no extra DMAs per block).
            pl.BlockSpec(memory_space=pltpu.MemorySpace.SMEM),
            pl.BlockSpec((tile_rows, LANES), lambda i: (i, 0)),
        ],
        out_specs=pl.BlockSpec((tile_rows, LANES), lambda i: (i, 0)),
        compiler_params=pltpu.CompilerParams(
            # batch axis is embarrassingly parallel -> shard across TCs (v7x)
            dimension_semantics=("parallel",),
            vmem_limit_bytes=32 * 1024 * 1024,
        ),
    )(params, x2d)

    return out2d.reshape(-1)[:N].reshape(N, 1)


def init_params(key):
    """Deterministic init mimicking PyTorch nn.Linear default
    (U[-1/sqrt(fan_in), 1/sqrt(fan_in)])."""
    k1, k2, k3, k4 = jax.random.split(key, 4)
    bound1 = 1.0 / math.sqrt(1.0)    # hidden: Linear(1, 10), fan_in = 1
    w1 = jax.random.uniform(k1, (1, H), jnp.float32, -bound1, bound1)   # (in, out)
    b1 = jax.random.uniform(k2, (H,), jnp.float32, -bound1, bound1)
    bound2 = 1.0 / math.sqrt(float(H))  # pre: Linear(10, 1), fan_in = 10
    w2 = jax.random.uniform(k3, (H, 1), jnp.float32, -bound2, bound2)   # (in, out)
    b2 = jax.random.uniform(k4, (1,), jnp.float32, -bound2, bound2)
    return w1, b1, w2, b2


def _reference(x, w1, b1, w2, b2):
    return jnp.maximum(x @ w1 + b1[None, :], 0.0) @ w2 + b2[None, :]


if __name__ == "__main__":
    key = jax.random.PRNGKey(0)
    kx, kp = jax.random.split(key)
    w1, b1, w2, b2 = init_params(kp)

    ok = True
    for n in (8, 300):   # tiny demo batch + one size exercising lane padding
        xi = jax.random.normal(jax.random.fold_in(kx, n), (n, 1), jnp.float32)
        out = jax.block_until_ready(net_r_forward(xi, w1, b1, w2, b2))
        ref = _reference(xi, w1, b1, w2, b2)
        ok &= out.shape == (n, 1)
        ok &= bool(jnp.allclose(out, ref, atol=1e-5, rtol=1e-5))

    assert ok
    print("KERNEL_OK")
</pallas_src>

<mosaic_0001>
module attributes {stable_mosaic.version = 11 : i64} {
  func.func @mlp_kernel(%arg0: i32, %arg1: memref<31xf32, #tpu.memory_space<smem>>, %arg2: memref<8x128xf32, #tpu.memory_space<vmem>>, %arg3: memref<8x128xf32, #tpu.memory_space<vmem>>) attributes {dimension_semantics = [#tpu.dimension_semantics<parallel>], iteration_bounds = array<i64: 1>, scalar_prefetch = 0 : i64, scratch_operands = 0 : i64, tpu.core_type = #tpu.core_type<tc>, window_params = [{transform_indices = @transform_0, window_bounds = array<i64: 31>}, {transform_indices = @transform_1, window_bounds = array<i64: 8, 128>}, {transform_indices = @transform_2, window_bounds = array<i64: 8, 128>}]} {
    %c0 = arith.constant 0 : index
    %c0_0 = arith.constant 0 : index
    %0 = vector.load %arg2[%c0, %c0_0] : memref<8x128xf32, #tpu.memory_space<vmem>>, vector<8x128xf32>
    %cst = arith.constant 0.000000e+00 : f32
    %1 = vector.broadcast %cst : f32 to vector<8x128xf32>
    %c0_1 = arith.constant 0 : index
    %2 = memref.load %arg1[%c0_1] : memref<31xf32, #tpu.memory_space<smem>>
    %c10 = arith.constant 10 : index
    %3 = memref.load %arg1[%c10] : memref<31xf32, #tpu.memory_space<smem>>
    %c20 = arith.constant 20 : index
    %4 = memref.load %arg1[%c20] : memref<31xf32, #tpu.memory_space<smem>>
    %5 = vector.broadcast %2 : f32 to vector<8x128xf32>
    %6 = arith.mulf %5, %0 : vector<8x128xf32>
    %7 = vector.broadcast %3 : f32 to vector<8x128xf32>
    %8 = arith.addf %6, %7 : vector<8x128xf32>
    %cst_2 = arith.constant 0.000000e+00 : f32
    %9 = vector.broadcast %cst_2 : f32 to vector<8x128xf32>
    %10 = arith.maximumf %8, %9 : vector<8x128xf32>
    %11 = vector.broadcast %4 : f32 to vector<8x128xf32>
    %12 = arith.mulf %11, %10 : vector<8x128xf32>
    %13 = arith.addf %1, %12 : vector<8x128xf32>
    %c1 = arith.constant 1 : index
    %14 = memref.load %arg1[%c1] : memref<31xf32, #tpu.memory_space<smem>>
    %c11 = arith.constant 11 : index
    %15 = memref.load %arg1[%c11] : memref<31xf32, #tpu.memory_space<smem>>
    %c21 = arith.constant 21 : index
    %16 = memref.load %arg1[%c21] : memref<31xf32, #tpu.memory_space<smem>>
    %17 = vector.broadcast %14 : f32 to vector<8x128xf32>
    %18 = arith.mulf %17, %0 : vector<8x128xf32>
    %19 = vector.broadcast %15 : f32 to vector<8x128xf32>
    %20 = arith.addf %18, %19 : vector<8x128xf32>
    %cst_3 = arith.constant 0.000000e+00 : f32
    %21 = vector.broadcast %cst_3 : f32 to vector<8x128xf32>
    %22 = arith.maximumf %20, %21 : vector<8x128xf32>
    %23 = vector.broadcast %16 : f32 to vector<8x128xf32>
    %24 = arith.mulf %23, %22 : vector<8x128xf32>
    %25 = arith.addf %13, %24 : vector<8x128xf32>
    %c2 = arith.constant 2 : index
    %26 = memref.load %arg1[%c2] : memref<31xf32, #tpu.memory_space<smem>>
    %c12 = arith.constant 12 : index
    %27 = memref.load %arg1[%c12] : memref<31xf32, #tpu.memory_space<smem>>
    %c22 = arith.constant 22 : index
    %28 = memref.load %arg1[%c22] : memref<31xf32, #tpu.memory_space<smem>>
    %29 = vector.broadcast %26 : f32 to vector<8x128xf32>
    %30 = arith.mulf %29, %0 : vector<8x128xf32>
    %31 = vector.broadcast %27 : f32 to vector<8x128xf32>
    %32 = arith.addf %30, %31 : vector<8x128xf32>
    %cst_4 = arith.constant 0.000000e+00 : f32
    %33 = vector.broadcast %cst_4 : f32 to vector<8x128xf32>
    %34 = arith.maximumf %32, %33 : vector<8x128xf32>
    %35 = vector.broadcast %28 : f32 to vector<8x128xf32>
    %36 = arith.mulf %35, %34 : vector<8x128xf32>
    %37 = arith.addf %25, %36 : vector<8x128xf32>
    %c3 = arith.constant 3 : index
    %38 = memref.load %arg1[%c3] : memref<31xf32, #tpu.memory_space<smem>>
    %c13 = arith.constant 13 : index
    %39 = memref.load %arg1[%c13] : memref<31xf32, #tpu.memory_space<smem>>
    %c23 = arith.constant 23 : index
    %40 = memref.load %arg1[%c23] : memref<31xf32, #tpu.memory_space<smem>>
    %41 = vector.broadcast %38 : f32 to vector<8x128xf32>
    %42 = arith.mulf %41, %0 : vector<8x128xf32>
    %43 = vector.broadcast %39 : f32 to vector<8x128xf32>
    %44 = arith.addf %42, %43 : vector<8x128xf32>
    %cst_5 = arith.constant 0.000000e+00 : f32
    %45 = vector.broadcast %cst_5 : f32 to vector<8x128xf32>
    %46 = arith.maximumf %44, %45 : vector<8x128xf32>
    %47 = vector.broadcast %40 : f32 to vector<8x128xf32>
    %48 = arith.mulf %47, %46 : vector<8x128xf32>
    %49 = arith.addf %37, %48 : vector<8x128xf32>
    %c4 = arith.constant 4 : index
    %50 = memref.load %arg1[%c4] : memref<31xf32, #tpu.memory_space<smem>>
    %c14 = arith.constant 14 : index
    %51 = memref.load %arg1[%c14] : memref<31xf32, #tpu.memory_space<smem>>
    %c24 = arith.constant 24 : index
    %52 = memref.load %arg1[%c24] : memref<31xf32, #tpu.memory_space<smem>>
    %53 = vector.broadcast %50 : f32 to vector<8x128xf32>
    %54 = arith.mulf %53, %0 : vector<8x128xf32>
    %55 = vector.broadcast %51 : f32 to vector<8x128xf32>
    %56 = arith.addf %54, %55 : vector<8x128xf32>
    %cst_6 = arith.constant 0.000000e+00 : f32
    %57 = vector.broadcast %cst_6 : f32 to vector<8x128xf32>
    %58 = arith.maximumf %56, %57 : vector<8x128xf32>
    %59 = vector.broadcast %52 : f32 to vector<8x128xf32>
    %60 = arith.mulf %59, %58 : vector<8x128xf32>
    %61 = arith.addf %49, %60 : vector<8x128xf32>
    %c5 = arith.constant 5 : index
    %62 = memref.load %arg1[%c5] : memref<31xf32, #tpu.memory_space<smem>>
    %c15 = arith.constant 15 : index
    %63 = memref.load %arg1[%c15] : memref<31xf32, #tpu.memory_space<smem>>
    %c25 = arith.constant 25 : index
    %64 = memref.load %arg1[%c25] : memref<31xf32, #tpu.memory_space<smem>>
    %65 = vector.broadcast %62 : f32 to vector<8x128xf32>
    %66 = arith.mulf %65, %0 : vector<8x128xf32>
    %67 = vector.broadcast %63 : f32 to vector<8x128xf32>
    %68 = arith.addf %66, %67 : vector<8x128xf32>
    %cst_7 = arith.constant 0.000000e+00 : f32
    %69 = vector.broadcast %cst_7 : f32 to vector<8x128xf32>
    %70 = arith.maximumf %68, %69 : vector<8x128xf32>
    %71 = vector.broadcast %64 : f32 to vector<8x128xf32>
    %72 = arith.mulf %71, %70 : vector<8x128xf32>
    %73 = arith.addf %61, %72 : vector<8x128xf32>
    %c6 = arith.constant 6 : index
    %74 = memref.load %arg1[%c6] : memref<31xf32, #tpu.memory_space<smem>>
    %c16 = arith.constant 16 : index
    %75 = memref.load %arg1[%c16] : memref<31xf32, #tpu.memory_space<smem>>
    %c26 = arith.constant 26 : index
    %76 = memref.load %arg1[%c26] : memref<31xf32, #tpu.memory_space<smem>>
    %77 = vector.broadcast %74 : f32 to vector<8x128xf32>
    %78 = arith.mulf %77, %0 : vector<8x128xf32>
    %79 = vector.broadcast %75 : f32 to vector<8x128xf32>
    %80 = arith.addf %78, %79 : vector<8x128xf32>
    %cst_8 = arith.constant 0.000000e+00 : f32
    %81 = vector.broadcast %cst_8 : f32 to vector<8x128xf32>
    %82 = arith.maximumf %80, %81 : vector<8x128xf32>
    %83 = vector.broadcast %76 : f32 to vector<8x128xf32>
    %84 = arith.mulf %83, %82 : vector<8x128xf32>
    %85 = arith.addf %73, %84 : vector<8x128xf32>
    %c7 = arith.constant 7 : index
    %86 = memref.load %arg1[%c7] : memref<31xf32, #tpu.memory_space<smem>>
    %c17 = arith.constant 17 : index
    %87 = memref.load %arg1[%c17] : memref<31xf32, #tpu.memory_space<smem>>
    %c27 = arith.constant 27 : index
    %88 = memref.load %arg1[%c27] : memref<31xf32, #tpu.memory_space<smem>>
    %89 = vector.broadcast %86 : f32 to vector<8x128xf32>
    %90 = arith.mulf %89, %0 : vector<8x128xf32>
    %91 = vector.broadcast %87 : f32 to vector<8x128xf32>
    %92 = arith.addf %90, %91 : vector<8x128xf32>
    %cst_9 = arith.constant 0.000000e+00 : f32
    %93 = vector.broadcast %cst_9 : f32 to vector<8x128xf32>
    %94 = arith.maximumf %92, %93 : vector<8x128xf32>
    %95 = vector.broadcast %88 : f32 to vector<8x128xf32>
    %96 = arith.mulf %95, %94 : vector<8x128xf32>
    %97 = arith.addf %85, %96 : vector<8x128xf32>
    %c8 = arith.constant 8 : index
    %98 = memref.load %arg1[%c8] : memref<31xf32, #tpu.memory_space<smem>>
    %c18 = arith.constant 18 : index
    %99 = memref.load %arg1[%c18] : memref<31xf32, #tpu.memory_space<smem>>
    %c28 = arith.constant 28 : index
    %100 = memref.load %arg1[%c28] : memref<31xf32, #tpu.memory_space<smem>>
    %101 = vector.broadcast %98 : f32 to vector<8x128xf32>
    %102 = arith.mulf %101, %0 : vector<8x128xf32>
    %103 = vector.broadcast %99 : f32 to vector<8x128xf32>
    %104 = arith.addf %102, %103 : vector<8x128xf32>
    %cst_10 = arith.constant 0.000000e+00 : f32
    %105 = vector.broadcast %cst_10 : f32 to vector<8x128xf32>
    %106 = arith.maximumf %104, %105 : vector<8x128xf32>
    %107 = vector.broadcast %100 : f32 to vector<8x128xf32>
    %108 = arith.mulf %107, %106 : vector<8x128xf32>
    %109 = arith.addf %97, %108 : vector<8x128xf32>
    %c9 = arith.constant 9 : index
    %110 = memref.load %arg1[%c9] : memref<31xf32, #tpu.memory_space<smem>>
    %c19 = arith.constant 19 : index
    %111 = memref.load %arg1[%c19] : memref<31xf32, #tpu.memory_space<smem>>
    %c29 = arith.constant 29 : index
    %112 = memref.load %arg1[%c29] : memref<31xf32, #tpu.memory_space<smem>>
    %113 = vector.broadcast %110 : f32 to vector<8x128xf32>
    %114 = arith.mulf %113, %0 : vector<8x128xf32>
    %115 = vector.broadcast %111 : f32 to vector<8x128xf32>
    %116 = arith.addf %114, %115 : vector<8x128xf32>
    %cst_11 = arith.constant 0.000000e+00 : f32
    %117 = vector.broadcast %cst_11 : f32 to vector<8x128xf32>
    %118 = arith.maximumf %116, %117 : vector<8x128xf32>
    %119 = vector.broadcast %112 : f32 to vector<8x128xf32>
    %120 = arith.mulf %119, %118 : vector<8x128xf32>
    %121 = arith.addf %109, %120 : vector<8x128xf32>
    %c30 = arith.constant 30 : index
    %122 = memref.load %arg1[%c30] : memref<31xf32, #tpu.memory_space<smem>>
    %123 = vector.broadcast %122 : f32 to vector<8x128xf32>
    %124 = arith.addf %121, %123 : vector<8x128xf32>
    %c0_12 = arith.constant 0 : index
    %c0_13 = arith.constant 0 : index
    %125 = vector.load %arg3[%c0_12, %c0_13] : memref<8x128xf32, #tpu.memory_space<vmem>>, vector<8x128xf32>
    tpu.vector_store %arg3[%c0_12, %c0_13], %124 {strides = array<i32>} : memref<8x128xf32, #tpu.memory_space<vmem>>, vector<8x128xf32>,
    return
  }
  func.func @transform_0(%arg0: i32) -> i32 {
    %c0_i32 = arith.constant 0 : i32
    %c0_i32_0 = arith.constant 0 : i32
    return %c0_i32 : i32
  }
  func.func @transform_1(%arg0: i32) -> (i32, i32) {
    %c0_i32 = arith.constant 0 : i32
    %c0_i32_0 = arith.constant 0 : i32
    return %arg0, %c0_i32 : i32, i32
  }
  func.func @transform_2(%arg0: i32) -> (i32, i32) {
    %c0_i32 = arith.constant 0 : i32
    %c0_i32_0 = arith.constant 0 : i32
    return %arg0, %c0_i32 : i32, i32
  }
}

</mosaic_0001>

<llo_original>
// kernel: tpu_custom_call.1
$region0: #{tpu_custom_call.1}
  #allocation0 [shape = 'u32[]', space=smem, size = 0x4, offset = 0x4, fixed_abs, tag = 'smem constant byte address 0x4 - core index']
  #allocation1 [shape = 'u32[144,128]{1,0:T(1,128)}', space=vmem, size = 0x12000, scoped, tag = 'internal scratch']
  %s0 = inlined_call_operand.hbm [shape: f32[31], index: 0, kind: input, shape index: {}]
  %s1 = inlined_call_operand.hbm [shape: f32[8,128], index: 1, kind: input, shape index: {}]
  %s2 = inlined_call_operand.hbm [shape: f32[8,128], index: 2, kind: output, shape index: {}]
  %s3 = sld [smem:[#allocation0]]
  $region26: #{tpu_custom_call.1} parent=0
    _
  %s5 = ssub.s32 1, %s3
  %s6 = scalar_select 0, %s5, %s3
  $region1: #{tpu_custom_call.1} parent=0
    #allocation2 [shape = 'u8[512]{0}', space=smem, size = 0x200, scoped, tag = 'input window, operand 0, single buffered']
    #allocation3 [shape = 's32[1]{0}', space=sflag, size = 0x4, scoped, tag = 'scoped memory for tpu_custom_call.1']
    #allocation4 [shape = 's32[1]{0}', space=sflag, size = 0x4, scoped, tag = 'scoped memory for tpu_custom_call.1']
    #allocation5 [shape = 's32[1]{0}', space=sflag, size = 0x4, scoped, tag = 'scoped memory for tpu_custom_call.1']
    #allocation6 [shape = 'u8[4096]{0}', space=vmem, size = 0x1000, scoped, tag = 'input window, operand 1, single buffered']
    #allocation7 [shape = 'u8[4096]{0}', space=vmem, size = 0x1000, scoped, tag = 'output window, operand 0, single buffered']
    %7 = vsyncpa [#allocation5], 0
    %8 = vsyncpa [#allocation3], 0
    %9 = vsyncpa [#allocation4], 0
    // Predicated region
    $region2: #{tpu_custom_call.1} parent=1 // pred_check
      _
    $region3: #{tpu_custom_call.1} parent=1 // pred_check_branch
      %11 = sbr.rel (0) target = $region5
    $region4: #{tpu_custom_call.1} parent=1 // pred_region
      %s13 = ssub.s32 16, 16
      %14 = vsyncadd [#allocation5], %s13
      %17 = dma.hbm_to_smem %s0, 16, [#allocation2], [#allocation5]
    $region5: #{tpu_custom_call.1} parent=1 // pred_fallthru
      _
    // Predicated region
    $region6: #{tpu_custom_call.1} parent=1 // pred_check
      _
    $region7: #{tpu_custom_call.1} parent=1 // pred_check_branch
      %19 = sbr.rel (0) target = $region9
    $region8: #{tpu_custom_call.1} parent=1 // pred_region
      %s21 = ssub.s32 128, 128
      %22 = vsyncadd [#allocation3], %s21
      %s24 = sshll.u32 [#allocation6], 4
      %s25 = int_to_ptr.vmem [resolvable:$true] %s24
      %27 = dma.hbm_to_vmem [thread:$0]  %s1, 128, %s25, [#allocation3]
    $region9: #{tpu_custom_call.1} parent=1 // pred_fallthru
      _
    // Predicated region
    $region10: #{tpu_custom_call.1} parent=1 // pred_check
      _
    $region11: #{tpu_custom_call.1} parent=1 // pred_check_branch
      %29 = sbr.rel (0) target = $region13
    $region12: #{tpu_custom_call.1} parent=1 // pred_region
      %30 = dma.done [#allocation5], 16
    $region13: #{tpu_custom_call.1} parent=1 // pred_fallthru
      _
    // Predicated region
    $region14: #{tpu_custom_call.1} parent=1 // pred_check
      _
    $region15: #{tpu_custom_call.1} parent=1 // pred_check_branch
      %32 = sbr.rel (0) target = $region17
    $region16: #{tpu_custom_call.1} parent=1 // pred_region
      %33 = dma.done [#allocation3], 128
    $region17: #{tpu_custom_call.1} parent=1 // pred_fallthru
      _
    %34 = sfence
    %v35 = vld [vmem:[#allocation6] sm:$0xff]
    %s36 = sld [smem:[#allocation2]]
    %s37 = sld [smem:[#allocation2 + $0xa]]
    %s38 = sld [smem:[#allocation2 + $0x14]]
    %v39 = vstv %s36
    %v40 = vmul.f32 %v39, %v35
    %v41 = vstv %s37
    %v42 = vadd.f32 %v40, %v41
    %v43 = vmax.f32 %v42, 0.0
    %v44 = vstv %s38
    %v45 = vmul.f32 %v44, %v43
    %v46 = vadd.f32 %v45, 0.0
    %s47 = sld [smem:[#allocation2 + $0x1]]
    %s48 = sld [smem:[#allocation2 + $0xb]]
    %s49 = sld [smem:[#allocation2 + $0x15]]
    %v50 = vstv %s47
    %v51 = vmul.f32 %v50, %v35
    %v52 = vstv %s48
    %v53 = vadd.f32 %v51, %v52
    %v54 = vmax.f32 %v53, 0.0
    %v55 = vstv %s49
    %v56 = vmul.f32 %v55, %v54
    %v57 = vadd.f32 %v46, %v56
    %s58 = sld [smem:[#allocation2 + $0x2]]
    %s59 = sld [smem:[#allocation2 + $0xc]]
    %s60 = sld [smem:[#allocation2 + $0x16]]
    %v61 = vstv %s58
    %v62 = vmul.f32 %v61, %v35
    %v63 = vstv %s59
    %v64 = vadd.f32 %v62, %v63
    %v65 = vmax.f32 %v64, 0.0
    %v66 = vstv %s60
    %v67 = vmul.f32 %v66, %v65
    %v68 = vadd.f32 %v57, %v67
    %s69 = sld [smem:[#allocation2 + $0x3]]
    %s70 = sld [smem:[#allocation2 + $0xd]]
    %s71 = sld [smem:[#allocation2 + $0x17]]
    %v72 = vstv %s69
    %v73 = vmul.f32 %v72, %v35
    %v74 = vstv %s70
    %v75 = vadd.f32 %v73, %v74
    %v76 = vmax.f32 %v75, 0.0
    %v77 = vstv %s71
    %v78 = vmul.f32 %v77, %v76
    %v79 = vadd.f32 %v68, %v78
    %s80 = sld [smem:[#allocation2 + $0x4]]
    %s81 = sld [smem:[#allocation2 + $0xe]]
    %s82 = sld [smem:[#allocation2 + $0x18]]
    %v83 = vstv %s80
    %v84 = vmul.f32 %v83, %v35
    %v85 = vstv %s81
    %v86 = vadd.f32 %v84, %v85
    %v87 = vmax.f32 %v86, 0.0
    %v88 = vstv %s82
    %v89 = vmul.f32 %v88, %v87
    %v90 = vadd.f32 %v79, %v89
    %s91 = sld [smem:[#allocation2 + $0x5]]
    %s92 = sld [smem:[#allocation2 + $0xf]]
    %s93 = sld [smem:[#allocation2 + $0x19]]
    %v94 = vstv %s91
    %v95 = vmul.f32 %v94, %v35
    %v96 = vstv %s92
    %v97 = vadd.f32 %v95, %v96
    %v98 = vmax.f32 %v97, 0.0
    %v99 = vstv %s93
    %v100 = vmul.f32 %v99, %v98
    %v101 = vadd.f32 %v90, %v100
    %s102 = sld [smem:[#allocation2 + $0x6]]
    %s103 = sld [smem:[#allocation2 + $0x10]]
    %s104 = sld [smem:[#allocation2 + $0x1a]]
    %v105 = vstv %s102
    %v106 = vmul.f32 %v105, %v35
    %v107 = vstv %s103
    %v108 = vadd.f32 %v106, %v107
    %v109 = vmax.f32 %v108, 0.0
    %v110 = vstv %s104
    %v111 = vmul.f32 %v110, %v109
    %v112 = vadd.f32 %v101, %v111
    %s113 = sld [smem:[#allocation2 + $0x7]]
    %s114 = sld [smem:[#allocation2 + $0x11]]
    %s115 = sld [smem:[#allocation2 + $0x1b]]
    %v116 = vstv %s113
    %v117 = vmul.f32 %v116, %v35
    %v118 = vstv %s114
    %v119 = vadd.f32 %v117, %v118
    %v120 = vmax.f32 %v119, 0.0
    %v121 = vstv %s115
    %v122 = vmul.f32 %v121, %v120
    %v123 = vadd.f32 %v112, %v122
    %s124 = sld [smem:[#allocation2 + $0x8]]
    %s125 = sld [smem:[#allocation2 + $0x12]]
    %s126 = sld [smem:[#allocation2 + $0x1c]]
    %v127 = vstv %s124
    %v128 = vmul.f32 %v127, %v35
    %v129 = vstv %s125
    %v130 = vadd.f32 %v128, %v129
    %v131 = vmax.f32 %v130, 0.0
    %v132 = vstv %s126
    %v133 = vmul.f32 %v132, %v131
    %v134 = vadd.f32 %v123, %v133
    %s135 = sld [smem:[#allocation2 + $0x9]]
    %s136 = sld [smem:[#allocation2 + $0x13]]
    %s137 = sld [smem:[#allocation2 + $0x1d]]
    %v138 = vstv %s135
    %v139 = vmul.f32 %v138, %v35
    %v140 = vstv %s136
    %v141 = vadd.f32 %v139, %v140
    %v142 = vmax.f32 %v141, 0.0
    %v143 = vstv %s137
    %v144 = vmul.f32 %v143, %v142
    %v145 = vadd.f32 %v134, %v144
    %s146 = sld [smem:[#allocation2 + $0x1e]]
    %v147 = vstv %s146
    %v148 = vadd.f32 %v145, %v147
    %149 = vst [vmem:[#allocation7] sm:$0xff] %v148
    // Predicated region
    $region18: #{tpu_custom_call.1} parent=1 // pred_check
      _
    $region19: #{tpu_custom_call.1} parent=1 // pred_check_branch
      %151 = sbr.rel (0) target = $region21
    $region20: #{tpu_custom_call.1} parent=1 // pred_region
      %s153 = ssub.s32 128, 128
      %154 = vsyncadd [#allocation4], %s153
      %s156 = sshll.u32 [#allocation7], 4
      %s157 = int_to_ptr.vmem [resolvable:$true] %s156
      %159 = dma.vmem_to_hbm [thread:$0]  %s157, 128, %s2, [#allocation4]
    $region21: #{tpu_custom_call.1} parent=1 // pred_fallthru
      _
    // Predicated region
    $region22: #{tpu_custom_call.1} parent=1 // pred_check
      _
    $region23: #{tpu_custom_call.1} parent=1 // pred_check_branch
      %161 = sbr.rel (0) target = $region25
    $region24: #{tpu_custom_call.1} parent=1 // pred_region
      %162 = dma.done [#allocation4], 128
    $region25: #{tpu_custom_call.1} parent=1 // pred_fallthru
      _
    %163 = vsyncpa [#allocation3], 1
    %164 = vsyncpa [#allocation4], 1
    %165 = vsyncpa [#allocation5], 1

</llo_original>
